<compile_context>
chip_gen: v7x
topology: tpu7x:2x2x1
jax: 0.10.0
libtpu: 0.0.40
codegen_flags: <defaults>
</compile_context>

<pallas_src>
import functools

import jax
import jax.numpy as jnp
from jax.experimental import pallas as pl
from jax.experimental.pallas import tpu as pltpu


def _round_up(v, m):
    return ((v + m - 1) // m) * m


def _circular_accuracy_partials_kernel(
    x_ref, t_ref, o_ref, *, step, max_plus_one, n_total, tile_n, fold, slab
):
    pid = pl.program_id(0)

    x = x_ref[...]                                   # (tile_n, slab), native dtype
    t = t_ref[...]                                   # (tile_n, 1) int32

    # Circular target shift; jnp.mod == floor-mod == torch `%`.
    t_shift = jnp.mod(t + jnp.int32(step), jnp.int32(max_plus_one))

    # Tail-row mask folded into the (tile_n, 1) target: invalid (padded) rows
    # point at column `slab`, which no lane index can match -> contribute 0.
    row = jax.lax.broadcasted_iota(jnp.int32, t.shape, dimension=0)
    valid = (row + pid * tile_n) < n_total
    t_sel = jnp.where(valid, t_shift, jnp.int32(slab))

    # One-hot row gather as a native-dtype select over the narrow column slab.
    col = jax.lax.broadcasted_iota(jnp.int32, x.shape, dimension=1)
    picked = jnp.where(col == t_sel, x, jnp.zeros_like(x))

    # Fold rows into `fold` sublanes: pure cross-vreg VPU adds, f32 accumulate.
    # (The single cross-lane reduce happens once, in the wrapper.)
    partial = jnp.sum(
        picked.reshape(tile_n // fold, fold, slab), axis=0, dtype=jnp.float32
    )
    o_ref[...] = partial


def circular_accuracy_loss(input_, target, *, max_=3, step=2, tile_n=4096):
    """Pallas-TPU CircularAccuracyLoss.forward.

    input_: (N, C) float predictions (any float dtype; stays native in-kernel)
    target: (N,)   integer raw targets
    returns scalar float32 loss = 1 - mean(input_[i, (target[i]+step) % (max_+1)])
    """
    n, c = input_.shape
    max_plus_one = max_ + 1
    if max_plus_one > c:
        # The PyTorch row-gather would raise an index error here; fail loudly
        # instead of silently contributing zeros.
        raise ValueError(
            f"max_+1 ({max_plus_one}) must be <= number of classes C ({c})"
        )

    # Sublane packing for the input dtype -> row-fold granularity & row multiple.
    itemsize = jnp.dtype(input_.dtype).itemsize
    fold = {4: 8, 2: 16, 1: 32}.get(itemsize, 8)

    # Column slab: only columns [0, max_+1) are ever selected after the modulo.
    if c > 128:
        needed = _round_up(max_plus_one, 128)
        slab = needed if needed < c else c
    else:
        slab = c

    # Row tile: multiple of the sublane packing; padded tail rows are masked
    # inside the kernel, so N need not divide the tile.
    tn = min(max(int(tile_n), fold), _round_up(n, fold))
    tn = _round_up(tn, fold)

    num_tiles = pl.cdiv(n, tn)

    target2d = target.reshape(n, 1)
    if target2d.dtype != jnp.int32:
        target2d = target2d.astype(jnp.int32)

    kernel = functools.partial(
        _circular_accuracy_partials_kernel,
        step=step,
        max_plus_one=max_plus_one,
        n_total=n,
        tile_n=tn,
        fold=fold,
        slab=slab,
    )

    partials = pl.pallas_call(
        kernel,
        out_shape=jax.ShapeDtypeStruct((num_tiles * fold, slab), jnp.float32),
        grid=(num_tiles,),
        in_specs=[
            pl.BlockSpec((tn, slab), lambda i: (i, 0)),   # streamed prediction slab
            pl.BlockSpec((tn, 1), lambda i: (i, 0)),      # matching target rows
        ],
        out_specs=pl.BlockSpec((fold, slab), lambda i: (i, 0)),  # per-tile partials
        compiler_params=pltpu.CompilerParams(
            dimension_semantics=("parallel",),            # independent tiles -> both TCs
            vmem_limit_bytes=32 * 1024 * 1024,
        ),
    )(input_, target2d)

    # Tiny final reduce (num_tiles*fold x slab f32) + mean/complement in XLA.
    return jnp.float32(1.0) - jnp.sum(partials) / jnp.float32(n)


def _reference(input_, target, *, max_=3, step=2):
    t = jnp.mod(target + step, max_ + 1)
    picked = input_[jnp.arange(input_.shape[0]), t]
    return 1.0 - picked.astype(jnp.float32).mean()


if __name__ == "__main__":
    key = jax.random.PRNGKey(0)
    k1, k2 = jax.random.split(key)

    # Small but representative: C > 128 exercises the 128-lane column slab,
    # N not a multiple of 8 exercises tail-row masking.
    N, C = 52, 160
    MAX_, STEP = 3, 2              # module defaults (self.max_ = max_ + 1 = 4)

    input_ = jax.random.normal(k1, (N, C), dtype=jnp.float32)
    target = jax.random.randint(k2, (N,), 0, MAX_ + 1, dtype=jnp.int32)

    ref = _reference(input_, target, max_=MAX_, step=STEP)

    # Default (single-tile) path.
    loss = jax.block_until_ready(
        circular_accuracy_loss(input_, target, max_=MAX_, step=STEP)
    )
    assert jnp.allclose(loss, ref, atol=1e-5, rtol=1e-5), (loss, ref)

    # Multi-tile path: parallel per-tile partials + padded-tail masking.
    loss_mt = jax.block_until_ready(
        circular_accuracy_loss(input_, target, max_=MAX_, step=STEP, tile_n=16)
    )
    assert jnp.allclose(loss_mt, ref, atol=1e-5, rtol=1e-5), (loss_mt, ref)

    # bf16 input: native-dtype select, f32-only-at-reduction path.
    input_bf16 = input_.astype(jnp.bfloat16)
    ref_bf16 = _reference(input_bf16, target, max_=MAX_, step=STEP)
    loss_bf16 = jax.block_until_ready(
        circular_accuracy_loss(input_bf16, target, max_=MAX_, step=STEP, tile_n=16)
    )
    assert jnp.allclose(loss_bf16, ref_bf16, atol=1e-3, rtol=1e-3), (loss_bf16, ref_bf16)

    print("KERNEL_OK")
</pallas_src>

<mosaic_0001>
module attributes {stable_mosaic.version = 11 : i64} {
  func.func @_circular_accuracy_partials_kernel(%arg0: i32, %arg1: memref<56x128xf32, #tpu.memory_space<vmem>>, %arg2: memref<56x1xi32, #tpu.memory_space<vmem>>, %arg3: memref<8x128xf32, #tpu.memory_space<vmem>>) attributes {dimension_semantics = [#tpu.dimension_semantics<parallel>], iteration_bounds = array<i64: 1>, scalar_prefetch = 0 : i64, scratch_operands = 0 : i64, tpu.core_type = #tpu.core_type<tc>, window_params = [{transform_indices = @transform_0, window_bounds = array<i64: 56, 128>}, {transform_indices = @transform_1, window_bounds = array<i64: 56, 1>}, {transform_indices = @transform_2, window_bounds = array<i64: 8, 128>}]} {
    %c0 = arith.constant 0 : index
    %c0_0 = arith.constant 0 : index
    %0 = vector.load %arg1[%c0, %c0_0] : memref<56x128xf32, #tpu.memory_space<vmem>>, vector<56x128xf32>
    %c0_1 = arith.constant 0 : index
    %c0_2 = arith.constant 0 : index
    %1 = vector.load %arg2[%c0_1, %c0_2] : memref<56x1xi32, #tpu.memory_space<vmem>>, vector<56x1xi32>
    %c2_i32 = arith.constant 2 : i32
    %2 = vector.broadcast %c2_i32 : i32 to vector<56x1xi32>
    %3 = arith.addi %1, %2 : vector<56x1xi32>
    %c4_i32 = arith.constant 4 : i32
    %c0_i32 = arith.constant 0 : i32
    %4 = arith.cmpi eq, %c4_i32, %c0_i32 : i32
    %c1_i32 = arith.constant 1 : i32
    %5 = arith.select %4, %c1_i32, %c4_i32 : i32
    %6 = vector.broadcast %5 : i32 to vector<56x1xi32>
    %7 = arith.remsi %3, %6 : vector<56x1xi32>
    %c0_i32_3 = arith.constant 0 : i32
    %8 = vector.broadcast %c0_i32_3 : i32 to vector<56x1xi32>
    %9 = arith.cmpi ne, %7, %8 : vector<56x1xi32>
    %c0_i32_4 = arith.constant 0 : i32
    %10 = vector.broadcast %c0_i32_4 : i32 to vector<56x1xi32>
    %11 = arith.cmpi slt, %7, %10 : vector<56x1xi32>
    %c0_i32_5 = arith.constant 0 : i32
    %12 = arith.cmpi slt, %5, %c0_i32_5 : i32
    %13 = vector.broadcast %12 : i1 to vector<56x1xi1>
    %14 = vector.broadcast %13 : vector<56x1xi1> to vector<56x1xi1>
    %15 = arith.xori %11, %14 : vector<56x1xi1>
    %16 = arith.andi %15, %9 : vector<56x1xi1>
    %17 = vector.broadcast %5 : i32 to vector<56x1xi32>
    %18 = arith.addi %7, %17 : vector<56x1xi32>
    %19 = arith.select %16, %18, %7 : vector<56x1xi1>, vector<56x1xi32>
    %20 = tpu.iota {dimensions = array<i32: 0>} : vector<56x1xi32>
    %c56_i32 = arith.constant 56 : i32
    %21 = arith.muli %arg0, %c56_i32 : i32
    %22 = vector.broadcast %21 : i32 to vector<56x1xi32>
    %23 = arith.addi %20, %22 : vector<56x1xi32>
    %c52_i32 = arith.constant 52 : i32
    %24 = vector.broadcast %c52_i32 : i32 to vector<56x1xi32>
    %25 = arith.cmpi slt, %23, %24 : vector<56x1xi32>
    %c128_i32 = arith.constant 128 : i32
    %26 = vector.broadcast %c128_i32 : i32 to vector<56x1xi32>
    %27 = arith.select %25, %19, %26 : vector<56x1xi1>, vector<56x1xi32>
    %28 = tpu.iota {dimensions = array<i32: 1>} : vector<56x128xi32>
    %29 = vector.broadcast %27 : vector<56x1xi32> to vector<56x128xi32>
    %30 = arith.cmpi eq, %28, %29 : vector<56x128xi32>
    %cst = arith.constant 0.000000e+00 : f32
    %31 = vector.broadcast %cst : f32 to vector<56x128xf32>
    %32 = arith.select %30, %0, %31 : vector<56x128xi1>, vector<56x128xf32>
    %33 = vector.shape_cast %32 : vector<56x128xf32> to vector<7x8x128xf32>
    %cst_6 = arith.constant dense<0.000000e+00> : vector<8x128xf32>
    %34 = vector.multi_reduction <add>, %33, %cst_6 [0] : vector<7x8x128xf32> to vector<8x128xf32>
    %c0_7 = arith.constant 0 : index
    %c0_8 = arith.constant 0 : index
    %35 = vector.load %arg3[%c0_7, %c0_8] : memref<8x128xf32, #tpu.memory_space<vmem>>, vector<8x128xf32>
    tpu.vector_store %arg3[%c0_7, %c0_8], %34 {strides = array<i32>} : memref<8x128xf32, #tpu.memory_space<vmem>>, vector<8x128xf32>,
    return
  }
  func.func @transform_0(%arg0: i32) -> (i32, i32) {
    %c0_i32 = arith.constant 0 : i32
    %c0_i32_0 = arith.constant 0 : i32
    return %arg0, %c0_i32 : i32, i32
  }
  func.func @transform_1(%arg0: i32) -> (i32, i32) {
    %c0_i32 = arith.constant 0 : i32
    %c0_i32_0 = arith.constant 0 : i32
    return %arg0, %c0_i32 : i32, i32
  }
  func.func @transform_2(%arg0: i32) -> (i32, i32) {
    %c0_i32 = arith.constant 0 : i32
    %c0_i32_0 = arith.constant 0 : i32
    return %arg0, %c0_i32 : i32, i32
  }
}

</mosaic_0001>

<llo_original>
// kernel: tpu_custom_call.1
$region0: #{tpu_custom_call.1}
  #allocation0 [shape = 'u32[]', space=smem, size = 0x4, offset = 0x4, fixed_abs, tag = 'smem constant byte address 0x4 - core index']
  #allocation1 [shape = 'u32[144,128]{1,0:T(1,128)}', space=vmem, size = 0x12000, scoped, tag = 'internal scratch']
  %s0 = inlined_call_operand.hbm [shape: f32[52,160], index: 0, kind: input, shape index: {}]
  %s1 = inlined_call_operand.vmem [shape: s32[52,1], index: 1, kind: input, shape index: {}]
  %s2 = inlined_call_operand.hbm [shape: f32[8,128], index: 2, kind: output, shape index: {}]
  %s3 = sld [smem:[#allocation0]]
  $region22: #{tpu_custom_call.1} parent=0
    _
  %s5 = ssub.s32 1, %s3
  %s6 = scalar_select 0, %s5, %s3
  $region1: #{tpu_custom_call.1} parent=0
    #allocation2 [shape = 'u8[28672]{0}', space=vmem, size = 0x7000, scoped, tag = 'input window, operand 0, single buffered']
    #allocation3 [shape = 's32[1]{0}', space=sflag, size = 0x4, scoped, tag = 'scoped memory for tpu_custom_call.1']
    #allocation4 [shape = 's32[1]{0}', space=sflag, size = 0x4, scoped, tag = 'scoped memory for tpu_custom_call.1']
    #allocation5 [shape = 'u8[4096]{0}', space=vmem, size = 0x1000, scoped, tag = 'output window, operand 0, single buffered']
    %7 = vsyncpa [#allocation3], 0
    %8 = vsyncpa [#allocation4], 0
    // Predicated region
    $region2: #{tpu_custom_call.1} parent=1 // pred_check
      _
    $region3: #{tpu_custom_call.1} parent=1 // pred_check_branch
      %10 = sbr.rel (0) target = $region5
    $region4: #{tpu_custom_call.1} parent=1 // pred_region
      %s12 = ssub.s32 896, 896
      %13 = vsyncadd [#allocation3], %s12
      %s14 = sshll.u32 [#allocation2], 4
      %s15 = int_to_ptr.vmem [resolvable:$true] %s14
      %20 = dma.hbm_to_vmem [thread:$0]  %s0, 896, %s15, [#allocation3], 256, 128, 8
    $region5: #{tpu_custom_call.1} parent=1 // pred_fallthru
      _
    // Predicated region
    $region6: #{tpu_custom_call.1} parent=1 // pred_check
      _
    $region7: #{tpu_custom_call.1} parent=1 // pred_check_branch
      %22 = sbr.rel (0) target = $region9
    $region8: #{tpu_custom_call.1} parent=1 // pred_region
      _
    $region9: #{tpu_custom_call.1} parent=1 // pred_fallthru
      _
    // Predicated region
    $region10: #{tpu_custom_call.1} parent=1 // pred_check
      _
    $region11: #{tpu_custom_call.1} parent=1 // pred_check_branch
      %24 = sbr.rel (0) target = $region13
    $region12: #{tpu_custom_call.1} parent=1 // pred_region
      %25 = dma.done [#allocation3], 896
    $region13: #{tpu_custom_call.1} parent=1 // pred_fallthru
      _
    %v26 = vld [vmem:[#allocation2] sm:$0xff]
    %v27 = vld [vmem:[#allocation2 + $0x8] sm:$0xff]
    %v28 = vld [vmem:[#allocation2 + $0x10] sm:$0xff]
    %v29 = vld [vmem:[#allocation2 + $0x18] sm:$0xff]
    %v30 = vld [vmem:[#allocation2 + $0x20] sm:$0xff]
    %v31 = vld [vmem:[#allocation2 + $0x28] sm:$0xff]
    %v32 = vld [vmem:[#allocation2 + $0x30] sm:$0xff]
    %v33 = vld [vmem:[%s1] sm:$0xff]
    %v34 = vld [vmem:[%s1 + $0x8] sm:$0xff]
    %v35 = vld [vmem:[%s1 + $0x10] sm:$0xff]
    %v36 = vld [vmem:[%s1 + $0x18] sm:$0xff]
    %v37 = vld [vmem:[%s1 + $0x20] sm:$0xff]
    %v38 = vld [vmem:[%s1 + $0x28] sm:$0xff]
    %v39 = vld [vmem:[%s1 + $0x30] sm:$0xff]
    %v40 = vadd.s32 %v33, 2
    %v41 = vadd.s32 %v34, 2
    %v42 = vadd.s32 %v35, 2
    %v43 = vadd.s32 %v36, 2
    %v44 = vadd.s32 %v37, 2
    %v45 = vadd.s32 %v38, 2
    %v46 = vadd.s32 %v39, 2
    %vm47 = vcmp.lt.s32.totalorder %v40, 0
    %v48 = vsub.s32 0, %v40
    %v49 = vsel %vm47, %v48, %v40
    %v50 = vshrl.u32 %v49, 2
    %v51 = vand.u32 %v49, 3
    %v52 = vsub.s32 0, %v51
    %v53 = vsel %vm47, %v52, %v51
    %vm54 = vcmp.lt.s32.totalorder %v41, 0
    %v55 = vsub.s32 0, %v41
    %v56 = vsel %vm54, %v55, %v41
    %v57 = vshrl.u32 %v56, 2
    %v58 = vand.u32 %v56, 3
    %v59 = vsub.s32 0, %v58
    %v60 = vsel %vm54, %v59, %v58
    %vm61 = vcmp.lt.s32.totalorder %v42, 0
    %v62 = vsub.s32 0, %v42
    %v63 = vsel %vm61, %v62, %v42
    %v64 = vshrl.u32 %v63, 2
    %v65 = vand.u32 %v63, 3
    %v66 = vsub.s32 0, %v65
    %v67 = vsel %vm61, %v66, %v65
    %vm68 = vcmp.lt.s32.totalorder %v43, 0
    %v69 = vsub.s32 0, %v43
    %v70 = vsel %vm68, %v69, %v43
    %v71 = vshrl.u32 %v70, 2
    %v72 = vand.u32 %v70, 3
    %v73 = vsub.s32 0, %v72
    %v74 = vsel %vm68, %v73, %v72
    %vm75 = vcmp.lt.s32.totalorder %v44, 0
    %v76 = vsub.s32 0, %v44
    %v77 = vsel %vm75, %v76, %v44
    %v78 = vshrl.u32 %v77, 2
    %v79 = vand.u32 %v77, 3
    %v80 = vsub.s32 0, %v79
    %v81 = vsel %vm75, %v80, %v79
    %vm82 = vcmp.lt.s32.totalorder %v45, 0
    %v83 = vsub.s32 0, %v45
    %v84 = vsel %vm82, %v83, %v45
    %v85 = vshrl.u32 %v84, 2
    %v86 = vand.u32 %v84, 3
    %v87 = vsub.s32 0, %v86
    %v88 = vsel %vm82, %v87, %v86
    %vm89 = vcmp.lt.s32.totalorder %v46, 0
    %v90 = vsub.s32 0, %v46
    %v91 = vsel %vm89, %v90, %v46
    %v92 = vshrl.u32 %v91, 2
    %v93 = vand.u32 %v91, 3
    %v94 = vsub.s32 0, %v93
    %v95 = vsel %vm89, %v94, %v93
    %vm96 = vcmp.ne.s32.totalorder %v53, 0
    %vm97 = vcmp.ne.s32.totalorder %v60, 0
    %vm98 = vcmp.ne.s32.totalorder %v67, 0
    %vm99 = vcmp.ne.s32.totalorder %v74, 0
    %vm100 = vcmp.ne.s32.totalorder %v81, 0
    %vm101 = vcmp.ne.s32.totalorder %v88, 0
    %vm102 = vcmp.ne.s32.totalorder %v95, 0
    %vm103 = vcmp.lt.s32.totalorder %v53, 0
    %vm104 = vcmp.lt.s32.totalorder %v60, 0
    %vm105 = vcmp.lt.s32.totalorder %v67, 0
    %vm106 = vcmp.lt.s32.totalorder %v74, 0
    %vm107 = vcmp.lt.s32.totalorder %v81, 0
    %vm108 = vcmp.lt.s32.totalorder %v88, 0
    %vm109 = vcmp.lt.s32.totalorder %v95, 0
    %vm110 = vmand %vm103, %vm96
    %vm111 = vmand %vm104, %vm97
    %vm112 = vmand %vm105, %vm98
    %vm113 = vmand %vm106, %vm99
    %vm114 = vmand %vm107, %vm100
    %vm115 = vmand %vm108, %vm101
    %vm116 = vmand %vm109, %vm102
    %v117 = vadd.s32 %v53, 4
    %v118 = vadd.s32 %v60, 4
    %v119 = vadd.s32 %v67, 4
    %v120 = vadd.s32 %v74, 4
    %v121 = vadd.s32 %v81, 4
    %v122 = vadd.s32 %v88, 4
    %v123 = vadd.s32 %v95, 4
    %v124 = vsel %vm110, %v117, %v53
    %v125 = vsel %vm111, %v118, %v60
    %v126 = vsel %vm112, %v119, %v67
    %v127 = vsel %vm113, %v120, %v74
    %v128 = vsel %vm114, %v121, %v81
    %v129 = vsel %vm115, %v122, %v88
    %v130 = vsel %vm116, %v123, %v95
    %v131 = vlaneseq
    %v132 = vshrl.u32 %v131, 7
    %v133 = vadd.s32 %v132, 8
    %v134 = vadd.s32 %v132, 16
    %v135 = vadd.s32 %v132, 24
    %v136 = vadd.s32 %v132, 32
    %v137 = vadd.s32 %v132, 40
    %v138 = vadd.s32 %v132, 48
    %s139 = smul.u32 0, 56
    %v140 = vstv %s139
    %v141 = vadd.s32 %v132, %v140
    %v142 = vadd.s32 %v133, %v140
    %v143 = vadd.s32 %v134, %v140
    %v144 = vadd.s32 %v135, %v140
    %v145 = vadd.s32 %v136, %v140
    %v146 = vadd.s32 %v137, %v140
    %v147 = vadd.s32 %v138, %v140
    %vm148 = vcmp.lt.s32.totalorder %v141, 52
    %vm149 = vcmp.lt.s32.totalorder %v142, 52
    %vm150 = vcmp.lt.s32.totalorder %v143, 52
    %vm151 = vcmp.lt.s32.totalorder %v144, 52
    %vm152 = vcmp.lt.s32.totalorder %v145, 52
    %vm153 = vcmp.lt.s32.totalorder %v146, 52
    %vm154 = vcmp.lt.s32.totalorder %v147, 52
    %v155 = vsel %vm148, %v124, 128
    %v156 = vsel %vm149, %v125, 128
    %v157 = vsel %vm150, %v126, 128
    %v158 = vsel %vm151, %v127, 128
    %v159 = vsel %vm152, %v128, 128
    %v160 = vsel %vm153, %v129, 128
    %v161 = vsel %vm154, %v130, 128
    %v162 = vlaneseq
    %v163 = vand.u32 %v162, 127
    %164 = vset.pattern.permute.xlu0 0
    %165 = vperm.xlu0 %164, %v155
    %v166 = vpop.permute.xlu0 %165
    %167 = vset.pattern.permute.xlu0 0
    %168 = vperm.xlu0 %167, %v156
    %v169 = vpop.permute.xlu0 %168
    %170 = vset.pattern.permute.xlu0 0
    %171 = vperm.xlu0 %170, %v157
    %v172 = vpop.permute.xlu0 %171
    %173 = vset.pattern.permute.xlu0 0
    %174 = vperm.xlu0 %173, %v158
    %v175 = vpop.permute.xlu0 %174
    %176 = vset.pattern.permute.xlu0 0
    %177 = vperm.xlu0 %176, %v159
    %v178 = vpop.permute.xlu0 %177
    %179 = vset.pattern.permute.xlu0 0
    %180 = vperm.xlu0 %179, %v160
    %v181 = vpop.permute.xlu0 %180
    %182 = vset.pattern.permute.xlu0 0
    %183 = vperm.xlu0 %182, %v161
    %v184 = vpop.permute.xlu0 %183
    %vm185 = vcmp.eq.s32.totalorder %v163, %v166
    %vm186 = vcmp.eq.s32.totalorder %v163, %v169
    %vm187 = vcmp.eq.s32.totalorder %v163, %v172
    %vm188 = vcmp.eq.s32.totalorder %v163, %v175
    %vm189 = vcmp.eq.s32.totalorder %v163, %v178
    %vm190 = vcmp.eq.s32.totalorder %v163, %v181
    %vm191 = vcmp.eq.s32.totalorder %v163, %v184
    %v192 = vsel %vm185, %v26, 0.0
    %v193 = vsel %vm186, %v27, 0.0
    %v194 = vsel %vm187, %v28, 0.0
    %v195 = vsel %vm188, %v29, 0.0
    %v196 = vsel %vm189, %v30, 0.0
    %v197 = vsel %vm190, %v31, 0.0
    %v198 = vsel %vm191, %v32, 0.0
    %v199 = vadd.f32 %v192, %v193
    %v200 = vadd.f32 %v199, %v194
    %v201 = vadd.f32 %v200, %v195
    %v202 = vadd.f32 %v201, %v196
    %v203 = vadd.f32 %v202, %v197
    %v204 = vadd.f32 %v203, %v198
    %205 = vst [vmem:[#allocation5] sm:$0xff] %v204
    // Predicated region
    $region14: #{tpu_custom_call.1} parent=1 // pred_check
      _
    $region15: #{tpu_custom_call.1} parent=1 // pred_check_branch
      %207 = sbr.rel (0) target = $region17
    $region16: #{tpu_custom_call.1} parent=1 // pred_region
      %s209 = ssub.s32 128, 128
      %210 = vsyncadd [#allocation4], %s209
      %s212 = sshll.u32 [#allocation5], 4
      %s213 = int_to_ptr.vmem [resolvable:$true] %s212
      %215 = dma.vmem_to_hbm [thread:$0]  %s213, 128, %s2, [#allocation4]
    $region17: #{tpu_custom_call.1} parent=1 // pred_fallthru
      _
    // Predicated region
    $region18: #{tpu_custom_call.1} parent=1 // pred_check
      _
    $region19: #{tpu_custom_call.1} parent=1 // pred_check_branch
      %217 = sbr.rel (0) target = $region21
    $region20: #{tpu_custom_call.1} parent=1 // pred_region
      %218 = dma.done [#allocation4], 128
    $region21: #{tpu_custom_call.1} parent=1 // pred_fallthru
      _
    %219 = vsyncpa [#allocation3], 1
    %220 = vsyncpa [#allocation4], 1

</llo_original>
